<compile_context>
chip_gen: v6e
topology: v6e:2x2x1
jax: 0.10.0
libtpu: 0.0.40
codegen_flags: <defaults>
</compile_context>

<pallas_src>
import functools

import jax
import jax.numpy as jnp
import numpy as np
from jax.experimental import pallas as pl
from jax.experimental.pallas import tpu as pltpu

N_CTRL_PTS = 5
_D = 3 * N_CTRL_PTS           # 15 = 5 control points x (x, y, z)
_DAUG = _D + N_CTRL_PTS + 1   # 21 = coords + 5 gnorm-selector cols + pnorm col
_N_SLAB = 2 * N_CTRL_PTS      # 10 squared-distance slabs per grid step


def _next_pow2(x):
    return 1 << (max(1, int(x)) - 1).bit_length()


@functools.lru_cache(maxsize=1)
def _chip_vmem_bytes():
    """Physical per-core VMEM (falls back to the v7x value, the smallest)."""
    try:
        cap = int(pltpu.get_tpu_info().vmem_capacity_bytes)
        if cap > 0:
            return cap
    except Exception:
        pass
    return 64 << 20


def _choose_tiling(Pp, g_bucket):
    """Pick (vmem_limit_bytes, gt tile size) from the chip's VMEM capacity."""
    cap = _chip_vmem_bytes()
    vmem_limit = min(int(cap * 0.7), 96 << 20)      # explicit, > scoped default
    live_budget = vmem_limit // 2                   # leave room for dbl-buffered
    tg = min(g_bucket, 1024 if cap >= (64 << 20) else 512)
    # ~30 Pp-tall f32 slabs live at once (sq + sqrt [10*Pp each], d1/d2/dist,
    # masks, iota, cand) plus a few [1, tg] rows.
    while tg > 128 and 4 * tg * (30 * Pp + 64) > live_budget:
        tg //= 2
    return vmem_limit, tg


# --------------------------------------------------------------------------
# Pallas kernel: fused pairwise ADD-S distances + reductions + conf weighting
# --------------------------------------------------------------------------
def _adds_kernel(sizes_ref, pred_ref, gt_ref, conf_ref, p2g_ref, g2p_ref,
                 acc_ref):
    o = pl.program_id(0)          # object / work-unit index   ("parallel")
    j = pl.program_id(1)          # gt tile index              ("arbitrary")

    p_real = sizes_ref[o, 0]      # valid pred rows for this object
    g_real = sizes_ref[o, 1]      # valid gt columns for this object

    Pp = conf_ref.shape[0]
    TG = gt_ref.shape[1]
    big = jnp.float32(3.0e38)     # finite sentinel (0 * sentinel stays finite)

    # Skip fully-padded grid steps (padded objects / gt tiles past g_real):
    # their output blocks are sliced off in the wrapper, so they may stay
    # undefined and we pay no MXU / EUP / VPU work for them.
    active = jnp.logical_and(p_real > 0, j * TG < g_real)

    @pl.when(active)
    def _():
        pred_big = pred_ref[...]                  # [10*Pp, 21]
        gt = gt_ref[...]                          # [21, TG]
        conf = conf_ref[...]                      # [Pp, 1]

        # ONE fused MXU matmul: row block m = s*5+k of `sq` holds the squared
        # distance |pred_ctrl_q - gt_ctrl_k|^2 (q = k for s=0, q = 4-k for
        # s=1), because pnorm / gnorm / -2*cross are all folded into the
        # block-structured LHS / augmented RHS built in the wrapper.
        sq = jnp.dot(pred_big, gt, preferred_element_type=jnp.float32)
        dpt = jnp.sqrt(jnp.maximum(sq, 0.0))      # [10*Pp, TG], single EUP pass

        d1 = dpt[0:Pp, :]
        d2 = dpt[N_CTRL_PTS * Pp:(N_CTRL_PTS + 1) * Pp, :]
        for k in range(1, N_CTRL_PTS):            # sublane-aligned static slices
            d1 = d1 + dpt[k * Pp:(k + 1) * Pp, :]
            d2 = d2 + dpt[(N_CTRL_PTS + k) * Pp:(N_CTRL_PTS + k + 1) * Pp, :]
        dist = jnp.minimum(d1, d2) * (1.0 / N_CTRL_PTS)         # [Pp, TG]

        col_ids = jax.lax.broadcasted_iota(jnp.int32, (1, TG), 1) + j * TG
        col_valid = col_ids < g_real                            # [1, TG]
        row_ids = jax.lax.broadcasted_iota(jnp.int32, (Pp, 1), 0)
        row_valid = row_ids < p_real                            # [Pp, 1]

        # pred -> gt: running min over gt tiles, carried in VMEM scratch.
        tile_min = jnp.min(jnp.where(col_valid, dist, big), axis=1,
                           keepdims=True)                       # [Pp, 1]

        @pl.when(j == 0)
        def _():
            acc_ref[...] = jnp.full(acc_ref.shape, big, acc_ref.dtype)

        acc_ref[...] = jnp.minimum(acc_ref[...], tile_min)

        # Final, lane-dense pred2gt store: once per object, at the last tile
        # that contains real gt columns.  The [Pp,1] -> [1,Pp] move is done
        # with a tiny select+reduce (runs once per object) instead of a
        # reshape/relayout.
        @pl.when((j + 1) * TG >= g_real)
        def _():
            prod = conf * acc_ref[...]                          # [Pp, 1]
            ri = jax.lax.broadcasted_iota(jnp.int32, (Pp, Pp), 0)
            ci = jax.lax.broadcasted_iota(jnp.int32, (Pp, Pp), 1)
            p2g_ref[...] = jnp.sum(jnp.where(ri == ci, prod, 0.0),
                                   axis=0, keepdims=True)       # [1, Pp]

        # gt -> pred: tile-local min + first-occurrence argmin conf gather.
        dist_rows = jnp.where(row_valid, dist, big)
        gt2pred = jnp.min(dist_rows, axis=0, keepdims=True)     # [1, TG]
        iota_p = jax.lax.broadcasted_iota(jnp.int32, (Pp, TG), 0)
        cand = jnp.where(dist_rows == gt2pred, iota_p, Pp)
        min_idx = jnp.min(cand, axis=0, keepdims=True)          # [1, TG]
        conf_sel = jnp.sum(jnp.where(iota_p == min_idx, conf, 0.0),
                           axis=0, keepdims=True)               # [1, TG]
        g2p_ref[...] = conf_sel * gt2pred


# --------------------------------------------------------------------------
# Batched wrapper (control-point transform + fused-matmul operand prep in XLA)
# --------------------------------------------------------------------------
@functools.partial(jax.jit, static_argnames=("tg", "vmem_limit"))
def _adds_pallas_batched(sizes, pred_poses, gt_poses, conf, ctr_pts, *, tg,
                         vmem_limit):
    """sizes [O,2] int32, pred_poses [O,Pp,4,4], gt_poses [O,Gp,4,4],
    conf [O,Pp], ctr_pts [4,5]  ->  (p2g [O,Pp], g2p [O,Gp])."""
    f32 = jnp.float32
    O, Pp = pred_poses.shape[0], pred_poses.shape[1]
    Gp = gt_poses.shape[1]

    # control-point transform (tiny matmuls, stays in XLA)
    pred_pts = jnp.einsum("opij,jk->opki", pred_poses, ctr_pts)[..., :3]
    gt_pts = jnp.einsum("ogij,jk->ogki", gt_poses, ctr_pts)[..., :3]

    # Per-object centroid shift: distances are translation invariant, and this
    # removes cancellation in the |p|^2 + |g|^2 - 2 p.g expansion.
    cen = jnp.mean(gt_pts, axis=(1, 2), keepdims=True)          # [O,1,1,3]
    pred_pts = pred_pts - cen                                   # [O,Pp,5,3]
    gt_pts = gt_pts - cen                                       # [O,Gp,5,3]

    pnorm = jnp.sum(pred_pts * pred_pts, axis=-1)               # [O,Pp,5]
    gnorm = jnp.sum(gt_pts * gt_pts, axis=-1)                   # [O,Gp,5]

    # Block-structured LHS: row block m = s*5 + k pairs pred ctrl q with gt
    # ctrl k (q = k for normal pairing, q = 4-k for the flipped pairing).
    eye5 = jnp.eye(N_CTRL_PTS, dtype=f32)
    blocks = []
    for s in range(2):
        for k in range(N_CTRL_PTS):
            q = k if s == 0 else N_CTRL_PTS - 1 - k
            coords = jnp.zeros((O, Pp, _D), f32)
            coords = coords.at[:, :, 3 * k:3 * k + 3].set(
                -2.0 * pred_pts[:, :, q, :])
            sel = jnp.broadcast_to(eye5[k], (O, Pp, N_CTRL_PTS))
            blocks.append(jnp.concatenate(
                [coords, sel, pnorm[:, :, q:q + 1]], axis=-1))  # [O,Pp,21]
    pred_big = jnp.concatenate(blocks, axis=1)                  # [O,10*Pp,21]

    gt_aug = jnp.concatenate(
        [jnp.swapaxes(gt_pts.reshape(O, Gp, _D), 1, 2),         # [O,15,Gp]
         jnp.swapaxes(gnorm, 1, 2),                             # [O, 5,Gp]
         jnp.ones((O, 1, Gp), f32)], axis=1)                    # [O,21,Gp]

    conf3 = conf.reshape(O, Pp, 1)

    p2g, g2p = pl.pallas_call(
        _adds_kernel,
        out_shape=(
            jax.ShapeDtypeStruct((O, 1, Pp), jnp.float32),      # lane-dense
            jax.ShapeDtypeStruct((O, 1, Gp), jnp.float32),
        ),
        grid_spec=pltpu.PrefetchScalarGridSpec(
            num_scalar_prefetch=1,
            grid=(O, Gp // tg),
            in_specs=[
                pl.BlockSpec((None, _N_SLAB * Pp, _DAUG),
                             lambda o, j, sz: (o, 0, 0)),
                pl.BlockSpec((None, _DAUG, tg), lambda o, j, sz: (o, 0, j)),
                pl.BlockSpec((None, Pp, 1), lambda o, j, sz: (o, 0, 0)),
            ],
            out_specs=(
                pl.BlockSpec((None, 1, Pp), lambda o, j, sz: (o, 0, 0)),
                pl.BlockSpec((None, 1, tg), lambda o, j, sz: (o, 0, j)),
            ),
            scratch_shapes=[pltpu.VMEM((Pp, 1), jnp.float32)],
        ),
        # TODO(synk): with a single work unit on v7x the only "parallel" axis
        # has extent 1; a pred-tile grid axis would let both TensorCores work.
        compiler_params=pltpu.CompilerParams(
            dimension_semantics=("parallel", "arbitrary"),
            vmem_limit_bytes=vmem_limit),
    )(sizes, pred_big, gt_aug, conf3)
    return p2g[:, 0, :], g2p[:, 0, :]


def adds_pallas_many(units, ctr_pts):
    """Batched ADD-S for a list of work units.

    units: list of (pred_grasps [P,4,4], confidence [P], gt_grasps [G,4,4])
    returns: list of (adds_pred2gt [P], adds_gt2pred [G]) per unit.
    """
    assert len(units) > 0
    n_units = len(units)
    p_max = max(int(u[0].shape[0]) for u in units)
    g_max = max(int(u[2].shape[0]) for u in units)

    # Pp: minimal (8,128)-friendly padding of pred rows (compute scales with
    # Pp, padded rows are only masked).  Gp: 128*pow2 bucket — padded gt tiles
    # are skipped by pl.when so the bucket only stabilizes compile shapes.
    Pp = 8 * pl.cdiv(p_max, 8)
    Gp = 128 * _next_pow2(pl.cdiv(g_max, 128))
    vmem_limit, tg = _choose_tiling(Pp, Gp)
    Op = 2 * pl.cdiv(n_units, 2)          # small even pad; dummies are skipped

    # Host-side numpy padding: one transfer instead of many tiny XLA dispatches.
    pred_b = np.zeros((Op, Pp, 4, 4), np.float32)
    gt_b = np.zeros((Op, Gp, 4, 4), np.float32)
    conf_b = np.zeros((Op, Pp), np.float32)
    sizes_b = np.zeros((Op, 2), np.int32)
    for i, (pred_g, conf, gt_g) in enumerate(units):
        P, G = int(pred_g.shape[0]), int(gt_g.shape[0])
        assert P > 0 and G > 0, "empty work units must be filtered by caller"
        pred_b[i, :P] = np.asarray(pred_g, np.float32)
        gt_b[i, :G] = np.asarray(gt_g, np.float32)
        conf_b[i, :P] = np.asarray(conf, np.float32)
        sizes_b[i, 0] = P
        sizes_b[i, 1] = G

    p2g, g2p = _adds_pallas_batched(
        sizes_b, pred_b, gt_b, conf_b,
        jnp.asarray(ctr_pts, jnp.float32), tg=tg, vmem_limit=vmem_limit)
    return [(p2g[i, :int(u[0].shape[0])], g2p[i, :int(u[2].shape[0])])
            for i, u in enumerate(units)]


def adds_pallas(pred_grasps, confidence, target_grasps, ctr_pts):
    """Single-pair ADD-S (same API as the PyTorch `adds`)."""
    return adds_pallas_many([(pred_grasps, confidence, target_grasps)],
                            ctr_pts)[0]


# --------------------------------------------------------------------------
# Pure-JAX reference (mirrors the PyTorch `adds`) for correctness check
# --------------------------------------------------------------------------
def adds_ref(pred_grasps, confidence, target_grasps, ctr_pts):
    pred_pts = jnp.swapaxes(pred_grasps @ ctr_pts, -2, -1)[..., :3]
    gt_pts = jnp.swapaxes(target_grasps @ ctr_pts, -2, -1)[..., :3]
    d1 = jnp.sqrt(jnp.clip(((pred_pts[:, None] - gt_pts[None]) ** 2).sum(-1),
                           0)).mean(-1)
    d2 = jnp.sqrt(jnp.clip(((pred_pts[:, None] - gt_pts[:, ::-1][None]) ** 2
                            ).sum(-1), 0)).mean(-1)
    dist = jnp.minimum(d1, d2)
    pred2gt = dist.min(axis=1)
    gt2pred = dist.min(axis=0)
    idx = dist.argmin(axis=0)
    return confidence * pred2gt, confidence[idx] * gt2pred


def adds_ref_many(units, ctr_pts):
    return [adds_ref(p, c, g, ctr_pts) for p, c, g in units]


# --------------------------------------------------------------------------
# ADDSCriterion (forward only)
# --------------------------------------------------------------------------
def load_control_points(gripper_name):
    # Deterministic synthetic gripper control points (panda-like), shape [4,5]
    # (3D points in homogeneous coordinates, one column per control point).
    pts = jnp.array(
        [
            [0.000, 0.000, 0.000],
            [0.053, -0.053, 0.075],
            [-0.053, 0.053, 0.075],
            [0.053, -0.053, 0.105],
            [-0.053, 0.053, 0.105],
        ],
        dtype=jnp.float32,
    )  # [5, 3]
    return jnp.concatenate([pts, jnp.ones((N_CTRL_PTS, 1), jnp.float32)],
                           axis=1).T  # [4, 5]


class ADDSCriterion:
    def __init__(self, pred2gt_weight, gt2pred_weight, adds_per_obj,
                 gripper_name):
        self.gripper_name = gripper_name
        self.loss_weights = {"adds_pred2gt": pred2gt_weight,
                             "adds_gt2pred": gt2pred_weight}
        self.adds_per_obj = adds_per_obj
        self.control_points = load_control_points(gripper_name)

    def forward(self, pred_grasps, confidence, gt_grasps, device=None,
                adds_many_fn=adds_pallas_many):
        del device  # kept for API parity with the torch module
        ctr_pts = self.control_points
        # Gather all work units, then do ONE batched kernel launch.
        units, pred_splits, gt_splits = [], [], []
        for pred_grasp, conf, gt_grasp in zip(pred_grasps, confidence,
                                              gt_grasps):
            if self.adds_per_obj:
                for pred, c, gt in zip(pred_grasp, conf, gt_grasp):
                    if pred.shape[0] == 0 or gt.shape[0] == 0:
                        continue
                    units.append((pred, c, gt))
                    pred_splits.append([pred.shape[0]])
                    gt_splits.append([gt.shape[0]])
            else:
                if len(pred_grasp) == 0 or len(gt_grasp) == 0:
                    continue
                num_grasps = [g.shape[0] for g in pred_grasp]
                num_gt_grasps = [g.shape[0] for g in gt_grasp]
                pred_cat = jnp.concatenate(pred_grasp)
                conf_cat = jnp.concatenate(conf)
                gt_cat = jnp.concatenate(gt_grasp)
                if pred_cat.shape[0] == 0 or gt_cat.shape[0] == 0:
                    continue
                units.append((pred_cat, conf_cat, gt_cat))
                pred_splits.append(num_grasps)
                gt_splits.append(num_gt_grasps)

        adds_pred2gt, adds_gt2pred = [], []
        if units:
            results = adds_many_fn(units, ctr_pts)
            for (p2g, g2p), p_split, g_split in zip(results, pred_splits,
                                                    gt_splits):
                off = 0
                for n in p_split:
                    if n > 0:
                        adds_pred2gt.append(p2g[off:off + n].mean())
                    off += n
                off = 0
                for n in g_split:
                    if n > 0:
                        adds_gt2pred.append(g2p[off:off + n].mean())
                    off += n

        zero = jnp.zeros((), jnp.float32)
        losses = {"adds_pred2gt": zero, "adds_gt2pred": zero}
        if len(adds_pred2gt) > 0:
            losses["adds_pred2gt"] = jnp.stack(adds_pred2gt).mean()
        if len(adds_gt2pred) > 0:
            losses["adds_gt2pred"] = jnp.stack(adds_gt2pred).mean()
        return {k: (self.loss_weights[k], losses[k]) for k in losses}

    __call__ = forward


# --------------------------------------------------------------------------
# Demo / self-test
# --------------------------------------------------------------------------
def _random_grasps(key, n):
    """n random 4x4 homogeneous transforms (not strictly orthonormal; fine)."""
    k1, k2 = jax.random.split(key)
    top = jnp.concatenate(
        [0.5 * jax.random.normal(k1, (n, 3, 3), jnp.float32),
         0.3 * jax.random.normal(k2, (n, 3, 1), jnp.float32)], axis=-1)
    bottom = jnp.tile(jnp.array([[[0.0, 0.0, 0.0, 1.0]]], jnp.float32),
                      (n, 1, 1))
    return jnp.concatenate([top, bottom], axis=1)  # [n, 4, 4]


if __name__ == "__main__":
    key = jax.random.PRNGKey(0)
    keys = jax.random.split(key, 12)

    # batch of 2 scenes; scene 0 has 2 objects, scene 1 has 1 object
    pred_counts = [[8, 5], [7]]
    gt_counts = [[6, 7], [4]]

    kidx = 0
    pred_grasps, confidences, gt_grasps = [], [], []
    for pc_list, gc_list in zip(pred_counts, gt_counts):
        p_scene, c_scene, g_scene = [], [], []
        for pc, gc in zip(pc_list, gc_list):
            p_scene.append(_random_grasps(keys[kidx], pc)); kidx += 1
            c_scene.append(jax.random.uniform(keys[kidx], (pc,),
                                              jnp.float32)); kidx += 1
            g_scene.append(_random_grasps(keys[kidx], gc)); kidx += 1
        pred_grasps.append(p_scene)
        confidences.append(c_scene)
        gt_grasps.append(g_scene)

    ctr_pts = load_control_points("panda")

    # direct single-pair check: Pallas kernel vs pure-JAX reference
    p2g_k, g2p_k = adds_pallas(pred_grasps[0][0], confidences[0][0],
                               gt_grasps[0][0], ctr_pts)
    jax.block_until_ready(p2g_k)
    p2g_r, g2p_r = adds_ref(pred_grasps[0][0], confidences[0][0],
                            gt_grasps[0][0], ctr_pts)
    assert jnp.allclose(p2g_k, p2g_r, atol=1e-4, rtol=1e-4), "p2g mismatch"
    assert jnp.allclose(g2p_k, g2p_r, atol=1e-4, rtol=1e-4), "g2p mismatch"

    # full criterion forward, both adds_per_obj modes, Pallas vs reference
    for per_obj in (True, False):
        criterion = ADDSCriterion(pred2gt_weight=1.0, gt2pred_weight=0.5,
                                  adds_per_obj=per_obj, gripper_name="panda")
        losses = criterion(pred_grasps, confidences, gt_grasps,
                           adds_many_fn=adds_pallas_many)
        jax.block_until_ready(losses["adds_pred2gt"][1])
        jax.block_until_ready(losses["adds_gt2pred"][1])

        losses_ref = criterion(pred_grasps, confidences, gt_grasps,
                               adds_many_fn=adds_ref_many)
        for k in ("adds_pred2gt", "adds_gt2pred"):
            a = float(losses[k][1])
            b = float(losses_ref[k][1])
            assert abs(a - b) <= 1e-4 + 1e-4 * abs(b), (per_obj, k, a, b)

    print("KERNEL_OK")
</pallas_src>

<mosaic_0001>
module attributes {stable_mosaic.version = 11 : i64} {
  func.func @_adds_kernel(%arg0: i32, %arg1: i32, %arg2: memref<2x2xi32, #tpu.memory_space<smem>>, %arg3: memref<1x80x21xf32, #tpu.memory_space<vmem>>, %arg4: memref<1x21x128xf32, #tpu.memory_space<vmem>>, %arg5: memref<1x8x1xf32, #tpu.memory_space<vmem>>, %arg6: memref<1x1x8xf32, #tpu.memory_space<vmem>>, %arg7: memref<1x1x128xf32, #tpu.memory_space<vmem>>, %arg8: memref<8x1xf32, #tpu.memory_space<vmem>>) attributes {dimension_semantics = [#tpu.dimension_semantics<parallel>, #tpu.dimension_semantics<arbitrary>], iteration_bounds = array<i64: 2, 1>, scalar_prefetch = 1 : i64, scratch_operands = 1 : i64, tpu.core_type = #tpu.core_type<tc>, window_params = [{transform_indices = @transform_0, window_bounds = array<i64: 1, 80, 21>}, {transform_indices = @transform_1, window_bounds = array<i64: 1, 21, 128>}, {transform_indices = @transform_2, window_bounds = array<i64: 1, 8, 1>}, {transform_indices = @transform_3, window_bounds = array<i64: 1, 1, 8>}, {transform_indices = @transform_4, window_bounds = array<i64: 1, 1, 128>}]} {
    %0 = arith.index_cast %arg0 : i32 to index
    %c0 = arith.constant 0 : index
    %1 = memref.load %arg2[%0, %c0] : memref<2x2xi32, #tpu.memory_space<smem>>
    %2 = arith.index_cast %arg0 : i32 to index
    %c1 = arith.constant 1 : index
    %3 = memref.load %arg2[%2, %c1] : memref<2x2xi32, #tpu.memory_space<smem>>
    %c0_i32 = arith.constant 0 : i32
    %4 = arith.cmpi sgt, %1, %c0_i32 : i32
    %c128_i32 = arith.constant 128 : i32
    %5 = arith.muli %arg1, %c128_i32 : i32
    %6 = arith.cmpi slt, %5, %3 : i32
    %7 = arith.andi %4, %6 : i1
    %8 = arith.extui %7 : i1 to i32
    %cst = arith.constant 3.000000e+38 : f32
    %c0_i32_0 = arith.constant 0 : i32
    %9 = arith.cmpi ne, %8, %c0_i32_0 : i32
    scf.if %9 {
      %c0_1 = arith.constant 0 : index
      %c0_2 = arith.constant 0 : index
      %c0_3 = arith.constant 0 : index
      %10 = vector.load %arg3[%c0_1, %c0_2, %c0_3] : memref<1x80x21xf32, #tpu.memory_space<vmem>>, vector<1x80x21xf32>
      %11 = vector.shape_cast %10 : vector<1x80x21xf32> to vector<80x21xf32>
      %c0_4 = arith.constant 0 : index
      %c0_5 = arith.constant 0 : index
      %c0_6 = arith.constant 0 : index
      %12 = vector.load %arg4[%c0_4, %c0_5, %c0_6] : memref<1x21x128xf32, #tpu.memory_space<vmem>>, vector<1x21x128xf32>
      %13 = vector.shape_cast %12 : vector<1x21x128xf32> to vector<21x128xf32>
      %c0_7 = arith.constant 0 : index
      %c0_8 = arith.constant 0 : index
      %c0_9 = arith.constant 0 : index
      %14 = vector.load %arg5[%c0_7, %c0_8, %c0_9] : memref<1x8x1xf32, #tpu.memory_space<vmem>>, vector<1x8x1xf32>
      %15 = vector.shape_cast %14 : vector<1x8x1xf32> to vector<8x1xf32>
      %cst_10 = arith.constant dense<0.000000e+00> : vector<80x128xf32>
      %16 = tpu.matmul %11, %13, %cst_10 {dimension_numbers = #tpu.dot_dimension_numbers<[1], [0], [0], [1], [0, 0, 1, 1], [], []>} : vector<80x21xf32>, vector<21x128xf32>, vector<80x128xf32> -> vector<80x128xf32>
      %cst_11 = arith.constant 0.000000e+00 : f32
      %17 = vector.broadcast %cst_11 : f32 to vector<80x128xf32>
      %18 = arith.maximumf %16, %17 : vector<80x128xf32>
      %19 = math.sqrt %18 : vector<80x128xf32>
      %20 = vector.extract_strided_slice %19 {offsets = [0, 0], sizes = [8, 128], strides = [1, 1]} : vector<80x128xf32> to vector<8x128xf32>
      %21 = vector.extract_strided_slice %19 {offsets = [40, 0], sizes = [8, 128], strides = [1, 1]} : vector<80x128xf32> to vector<8x128xf32>
      %22 = vector.extract_strided_slice %19 {offsets = [8, 0], sizes = [8, 128], strides = [1, 1]} : vector<80x128xf32> to vector<8x128xf32>
      %23 = arith.addf %20, %22 : vector<8x128xf32>
      %24 = vector.extract_strided_slice %19 {offsets = [48, 0], sizes = [8, 128], strides = [1, 1]} : vector<80x128xf32> to vector<8x128xf32>
      %25 = arith.addf %21, %24 : vector<8x128xf32>
      %26 = vector.extract_strided_slice %19 {offsets = [16, 0], sizes = [8, 128], strides = [1, 1]} : vector<80x128xf32> to vector<8x128xf32>
      %27 = arith.addf %23, %26 : vector<8x128xf32>
      %28 = vector.extract_strided_slice %19 {offsets = [56, 0], sizes = [8, 128], strides = [1, 1]} : vector<80x128xf32> to vector<8x128xf32>
      %29 = arith.addf %25, %28 : vector<8x128xf32>
      %30 = vector.extract_strided_slice %19 {offsets = [24, 0], sizes = [8, 128], strides = [1, 1]} : vector<80x128xf32> to vector<8x128xf32>
      %31 = arith.addf %27, %30 : vector<8x128xf32>
      %32 = vector.extract_strided_slice %19 {offsets = [64, 0], sizes = [8, 128], strides = [1, 1]} : vector<80x128xf32> to vector<8x128xf32>
      %33 = arith.addf %29, %32 : vector<8x128xf32>
      %34 = vector.extract_strided_slice %19 {offsets = [32, 0], sizes = [8, 128], strides = [1, 1]} : vector<80x128xf32> to vector<8x128xf32>
      %35 = arith.addf %31, %34 : vector<8x128xf32>
      %36 = vector.extract_strided_slice %19 {offsets = [72, 0], sizes = [8, 128], strides = [1, 1]} : vector<80x128xf32> to vector<8x128xf32>
      %37 = arith.addf %33, %36 : vector<8x128xf32>
      %38 = arith.minimumf %35, %37 : vector<8x128xf32>
      %cst_12 = arith.constant 2.000000e-01 : f32
      %39 = vector.broadcast %cst_12 : f32 to vector<8x128xf32>
      %40 = arith.mulf %38, %39 : vector<8x128xf32>
      %41 = tpu.iota {dimensions = array<i32: 1>} : vector<1x128xi32>
      %c128_i32_13 = arith.constant 128 : i32
      %42 = arith.muli %arg1, %c128_i32_13 : i32
      %43 = vector.broadcast %42 : i32 to vector<1x128xi32>
      %44 = arith.addi %41, %43 : vector<1x128xi32>
      %45 = vector.broadcast %3 : i32 to vector<1x128xi32>
      %46 = arith.cmpi slt, %44, %45 : vector<1x128xi32>
      %47 = tpu.iota {dimensions = array<i32: 0>} : vector<8x1xi32>
      %48 = vector.broadcast %1 : i32 to vector<8x1xi32>
      %49 = arith.cmpi slt, %47, %48 : vector<8x1xi32>
      %50 = vector.shape_cast %46 : vector<1x128xi1> to vector<1x128xi1>
      %51 = vector.broadcast %50 : vector<1x128xi1> to vector<8x128xi1>
      %52 = vector.broadcast %cst : f32 to vector<8x128xf32>
      %53 = arith.select %51, %40, %52 : vector<8x128xi1>, vector<8x128xf32>
      %cst_14 = arith.constant dense<0x7F800000> : vector<8xf32>
      %54 = vector.multi_reduction <minimumf>, %53, %cst_14 [1] : vector<8x128xf32> to vector<8xf32>
      %55 = vector.shape_cast %54 : vector<8xf32> to vector<8x1xf32>
      %c0_i32_15 = arith.constant 0 : i32
      %56 = arith.cmpi eq, %arg1, %c0_i32_15 : i32
      %57 = arith.extui %56 : i1 to i32
      %c0_i32_16 = arith.constant 0 : i32
      %58 = arith.cmpi ne, %57, %c0_i32_16 : i32
      scf.if %58 {
        %92 = vector.broadcast %cst : f32 to vector<8x1xf32>
        %c0_30 = arith.constant 0 : index
        %c0_31 = arith.constant 0 : index
        %93 = vector.load %arg8[%c0_30, %c0_31] : memref<8x1xf32, #tpu.memory_space<vmem>>, vector<8x1xf32>
        tpu.vector_store %arg8[%c0_30, %c0_31], %92 {strides = array<i32>} : memref<8x1xf32, #tpu.memory_space<vmem>>, vector<8x1xf32>,
      } else {
      }
      %c0_17 = arith.constant 0 : index
      %c0_18 = arith.constant 0 : index
      %59 = vector.load %arg8[%c0_17, %c0_18] : memref<8x1xf32, #tpu.memory_space<vmem>>, vector<8x1xf32>
      %60 = arith.minimumf %59, %55 : vector<8x1xf32>
      %c0_19 = arith.constant 0 : index
      %c0_20 = arith.constant 0 : index
      %61 = vector.load %arg8[%c0_19, %c0_20] : memref<8x1xf32, #tpu.memory_space<vmem>>, vector<8x1xf32>
      tpu.vector_store %arg8[%c0_19, %c0_20], %60 {strides = array<i32>} : memref<8x1xf32, #tpu.memory_space<vmem>>, vector<8x1xf32>,
      %c1_i32 = arith.constant 1 : i32
      %62 = arith.addi %arg1, %c1_i32 : i32
      %c128_i32_21 = arith.constant 128 : i32
      %63 = arith.muli %62, %c128_i32_21 : i32
      %64 = arith.cmpi sge, %63, %3 : i32
      %65 = arith.extui %64 : i1 to i32
      %c0_i32_22 = arith.constant 0 : i32
      %66 = arith.cmpi ne, %65, %c0_i32_22 : i32
      scf.if %66 {
        %c0_30 = arith.constant 0 : index
        %c0_31 = arith.constant 0 : index
        %92 = vector.load %arg8[%c0_30, %c0_31] : memref<8x1xf32, #tpu.memory_space<vmem>>, vector<8x1xf32>
        %93 = arith.mulf %15, %92 : vector<8x1xf32>
        %94 = tpu.iota {dimensions = array<i32: 0>} : vector<8x8xi32>
        %95 = tpu.iota {dimensions = array<i32: 1>} : vector<8x8xi32>
        %96 = arith.cmpi eq, %94, %95 : vector<8x8xi32>
        %cst_32 = arith.constant 0.000000e+00 : f32
        %97 = vector.shape_cast %93 : vector<8x1xf32> to vector<8x1xf32>
        %98 = vector.broadcast %97 : vector<8x1xf32> to vector<8x8xf32>
        %99 = vector.broadcast %cst_32 : f32 to vector<8x8xf32>
        %100 = arith.select %96, %98, %99 : vector<8x8xi1>, vector<8x8xf32>
        %cst_33 = arith.constant dense<0.000000e+00> : vector<8xf32>
        %101 = vector.multi_reduction <add>, %100, %cst_33 [0] : vector<8x8xf32> to vector<8xf32>
        %102 = vector.shape_cast %101 : vector<8xf32> to vector<1x8xf32>
        %c0_34 = arith.constant 0 : index
        %c0_35 = arith.constant 0 : index
        %c0_36 = arith.constant 0 : index
        %103 = vector.load %arg6[%c0_34, %c0_35, %c0_36] : memref<1x1x8xf32, #tpu.memory_space<vmem>>, vector<1x1x8xf32>
        %104 = vector.shape_cast %103 : vector<1x1x8xf32> to vector<1x8xf32>
        %105 = vector.shape_cast %102 : vector<1x8xf32> to vector<1x1x8xf32>
        tpu.vector_store %arg6[%c0_34, %c0_35, %c0_36], %105 {strides = array<i32>} : memref<1x1x8xf32, #tpu.memory_space<vmem>>, vector<1x1x8xf32>,
      } else {
      }
      %67 = vector.shape_cast %49 : vector<8x1xi1> to vector<8x1xi1>
      %68 = vector.broadcast %67 : vector<8x1xi1> to vector<8x128xi1>
      %69 = vector.broadcast %cst : f32 to vector<8x128xf32>
      %70 = arith.select %68, %40, %69 : vector<8x128xi1>, vector<8x128xf32>
      %cst_23 = arith.constant dense<0x7F800000> : vector<128xf32>
      %71 = vector.multi_reduction <minimumf>, %70, %cst_23 [0] : vector<8x128xf32> to vector<128xf32>
      %72 = vector.shape_cast %71 : vector<128xf32> to vector<1x128xf32>
      %73 = tpu.iota {dimensions = array<i32: 0>} : vector<8x128xi32>
      %74 = vector.broadcast %72 : vector<1x128xf32> to vector<8x128xf32>
      %75 = arith.cmpf oeq, %70, %74 : vector<8x128xf32>
      %c8_i32 = arith.constant 8 : i32
      %76 = vector.broadcast %c8_i32 : i32 to vector<8x128xi32>
      %77 = arith.select %75, %73, %76 : vector<8x128xi1>, vector<8x128xi32>
      %cst_24 = arith.constant dense<2147483647> : vector<128xi32>
      %78 = vector.multi_reduction <minsi>, %77, %cst_24 [0] : vector<8x128xi32> to vector<128xi32>
      %79 = vector.shape_cast %78 : vector<128xi32> to vector<1x128xi32>
      %80 = vector.broadcast %79 : vector<1x128xi32> to vector<8x128xi32>
      %81 = arith.cmpi eq, %73, %80 : vector<8x128xi32>
      %cst_25 = arith.constant 0.000000e+00 : f32
      %82 = vector.shape_cast %15 : vector<8x1xf32> to vector<8x1xf32>
      %83 = vector.broadcast %82 : vector<8x1xf32> to vector<8x128xf32>
      %84 = vector.broadcast %cst_25 : f32 to vector<8x128xf32>
      %85 = arith.select %81, %83, %84 : vector<8x128xi1>, vector<8x128xf32>
      %cst_26 = arith.constant dense<0.000000e+00> : vector<128xf32>
      %86 = vector.multi_reduction <add>, %85, %cst_26 [0] : vector<8x128xf32> to vector<128xf32>
      %87 = vector.shape_cast %86 : vector<128xf32> to vector<1x128xf32>
      %88 = arith.mulf %87, %72 : vector<1x128xf32>
      %c0_27 = arith.constant 0 : index
      %c0_28 = arith.constant 0 : index
      %c0_29 = arith.constant 0 : index
      %89 = vector.load %arg7[%c0_27, %c0_28, %c0_29] : memref<1x1x128xf32, #tpu.memory_space<vmem>>, vector<1x1x128xf32>
      %90 = vector.shape_cast %89 : vector<1x1x128xf32> to vector<1x128xf32>
      %91 = vector.shape_cast %88 : vector<1x128xf32> to vector<1x1x128xf32>
      tpu.vector_store %arg7[%c0_27, %c0_28, %c0_29], %91 {strides = array<i32>} : memref<1x1x128xf32, #tpu.memory_space<vmem>>, vector<1x1x128xf32>,
    } else {
    }
    return
  }
  func.func @transform_0(%arg0: i32, %arg1: i32, %arg2: memref<2x2xi32, #tpu.memory_space<smem>>) -> (i32, i32, i32) {
    %c0_i32 = arith.constant 0 : i32
    %c0_i32_0 = arith.constant 0 : i32
    %c0_i32_1 = arith.constant 0 : i32
    return %arg0, %c0_i32, %c0_i32_0 : i32, i32, i32
  }
  func.func @transform_1(%arg0: i32, %arg1: i32, %arg2: memref<2x2xi32, #tpu.memory_space<smem>>) -> (i32, i32, i32) {
    %c0_i32 = arith.constant 0 : i32
    %c0_i32_0 = arith.constant 0 : i32
    return %arg0, %c0_i32, %arg1 : i32, i32, i32
  }
  func.func @transform_2(%arg0: i32, %arg1: i32, %arg2: memref<2x2xi32, #tpu.memory_space<smem>>) -> (i32, i32, i32) {
    %c0_i32 = arith.constant 0 : i32
    %c0_i32_0 = arith.constant 0 : i32
    %c0_i32_1 = arith.constant 0 : i32
    return %arg0, %c0_i32, %c0_i32_0 : i32, i32, i32
  }
  func.func @transform_3(%arg0: i32, %arg1: i32, %arg2: memref<2x2xi32, #tpu.memory_space<smem>>) -> (i32, i32, i32) {
    %c0_i32 = arith.constant 0 : i32
    %c0_i32_0 = arith.constant 0 : i32
    %c0_i32_1 = arith.constant 0 : i32
    return %arg0, %c0_i32, %c0_i32_0 : i32, i32, i32
  }
  func.func @transform_4(%arg0: i32, %arg1: i32, %arg2: memref<2x2xi32, #tpu.memory_space<smem>>) -> (i32, i32, i32) {
    %c0_i32 = arith.constant 0 : i32
    %c0_i32_0 = arith.constant 0 : i32
    return %arg0, %c0_i32, %arg1 : i32, i32, i32
  }
}

</mosaic_0001>

<llo_original>
// kernel: _adds_pallas_batched.1
$region0: #{_adds_pallas_batched.1}
  #allocation0 [shape = 'u32[]', space=smem, size = 0x4, offset = 0x4, fixed_abs, tag = 'smem constant byte address 0x4 - core index']
  #allocation1 [shape = 'u32[144,128]{1,0:T(1,128)}', space=vmem, size = 0x12000, scoped, tag = 'internal scratch']
  #allocation2 [shape = 'f32[8,1]{1,0:T(8,128)}', space=vmem, size = 0x1000, scoped, tag = 'scratch operand']
  #allocation3 [shape = 's32[1]{0}', space=sflag, size = 0x4, scoped, tag = 'scoped memory for _adds_pallas_batched.1']
  #allocation4 [shape = 'u8[1024]{0}', space=smem, size = 0x400, scoped, tag = 'prefetched SMEM operand 0']
  %s0 = inlined_call_operand.vmem [shape: s32[2,2], index: 0, kind: input, shape index: {}]
  %s1 = inlined_call_operand.vmem [shape: f32[2,80,21], index: 1, kind: input, shape index: {}]
  %s2 = inlined_call_operand.vmem [shape: f32[2,21,128], index: 2, kind: input, shape index: {}]
  %s3 = inlined_call_operand.vmem [shape: f32[2,8,1], index: 3, kind: input, shape index: {}]
  %s4 = inlined_call_operand.hbm [shape: f32[2,1,8], index: 4, kind: output, shape index: {0}]
  %s5 = inlined_call_operand.hbm [shape: f32[2,1,128], index: 5, kind: output, shape index: {1}]
  %6 = xla_tuple %s4, %s5
  %s7 = sld [smem:[#allocation0]]
  $region65: #{_adds_pallas_batched.1} parent=0
    _
  %s9 = ssub.s32 1, %s7
  %s10 = scalar_select 0, %s9, %s7
  %s11 = sshll.u32 %s0, 4
  %s12 = int_to_ptr.vmem [resolvable:$true] %s11
  %14 = dma.vmem_to_smem %s12, 32, [#allocation4], [#allocation3]
  %15 = dma.done [#allocation3], 32
  %16 = sfence
  $region1: #{_adds_pallas_batched.1} parent=0
    #allocation5 [shape = 'u8[1024]{0}', space=vmem, size = 0x400, scoped, tag = 'output window, operand 0']
    #allocation6 [shape = 's32[2]{0}', space=sflag, size = 0x8, scoped, tag = 'scoped memory for _adds_pallas_batched.1']
    #allocation7 [shape = 'u8[1024]{0}', space=vmem, size = 0x400, scoped, tag = 'output window, operand 1']
    #allocation8 [shape = 's32[2]{0}', space=sflag, size = 0x8, scoped, tag = 'scoped memory for _adds_pallas_batched.1']
    %17 = vsyncpa [#allocation6], 0
    %s18 = scalar_lea.sflag [#allocation6], 1
    %19 = vsyncpa %s18, 0
    %20 = vsyncpa [#allocation8], 0
    %s21 = scalar_lea.sflag [#allocation8], 1
    %22 = vsyncpa %s21, 0
    loop: start=0, step=1, limit=4
    $region2: #{_adds_pallas_batched.1} parent=1 // loop_pre_header
      _
    $region3: #{_adds_pallas_batched.1} parent=1 // loop_header
      %s24 = sphi 0, %s28
      %p25 = scmp.ge.s32.totalorder %s24, 4
      %s31 = sphi 0, %s43
      %s32 = sphi 0, %s39
      %s33 = sphi 0, %s31
      %s34 = sphi 0, %s32
      %s35 = sphi 0, %s33
      %s36 = sphi 0, %s34
      %s46 = sphi 0, %s48
      %s49 = sphi 0, %s46
      %s50 = sphi 0, %s49
      %s66 = sphi 0, %s50
      %s74 = sphi 0, %s76
      %s77 = sphi 0, %s74
      %s78 = sphi 0, %s77
      %s94 = sphi 0, %s78
      %s100 = sphi 0, %s102
      %s103 = sphi 0, %s100
      %s104 = sphi 0, %s103
      %s120 = sphi 0, %s104
      %s126 = sphi 0, %s128
      %s129 = sphi 0, %s126
      %s130 = sphi 0, %s129
      %s146 = sphi 0, %s130
      %s154 = sphi 0, %s156
      %s157 = sphi 0, %s154
      %s158 = sphi 0, %s157
      %s174 = sphi 0, %s158
    $region4: #{_adds_pallas_batched.1} parent=1 // loop_header_branch
      %27 = sbr.rel (%p25) target = $region8
    $region5: #{_adds_pallas_batched.1} parent=1 // loop_body
      %s29 = ssub.s32 %s24, 1
      %s30 = ssub.s32 %s24, 2
      %s37 = sadd.s32 1, %s32
      %p38 = scmp.ge.s32.totalorder %s37, 1
      %s39 = scalar_select %p38, 0, %s37
      %s40 = sadd.s32 1, %s31
      %s41 = scalar_select %p38, %s40, %s31
      %p42 = scmp.ge.s32.totalorder %s41, 2
      %s43 = scalar_select %p42, 0, %s41
      %s44 = ssub.s32 %s31, %s43
      %p45 = scmp.eq.s32.totalorder %s44, 0
      %s47 = sadd.s32 %s46, 1
      %s48 = scalar_select %p45, %s46, %s47
      %p51 = pneg %p45
      %p52 = scmp.eq.s32.totalorder %s24, 1
      %p53 = por %p51, %p52
      %p54 = scmp.ne.s32.totalorder %s46, %s49
      %p55 = scmp.eq.s32.totalorder %s24, 0
      %p56 = por %p54, %p55
      %p57 = scmp.ne.s32.totalorder %s46, %s49
      %p58 = scmp.eq.s32.totalorder %s29, 1
      %p59 = por %p57, %p58
      %p60 = scmp.ne.s32.totalorder %s49, %s50
      %p61 = scmp.eq.s32.totalorder %s29, 0
      %p62 = por %p60, %p61
      %p63 = scmp.ne.s32.totalorder %s49, %s50
      %p64 = scmp.eq.s32.totalorder %s30, 1
      %p65 = por %p63, %p64
      %p67 = scmp.ne.s32.totalorder %s50, %s66
      %p68 = scmp.eq.s32.totalorder %s30, 0
      %p69 = por %p67, %p68
      %s70 = ssub.s32 %s31, %s43
      %s71 = ssub.s32 %s32, %s39
      %s72 = sor.u32 %s70, %s71
      %p73 = scmp.eq.s32.totalorder %s72, 0
      %s75 = sadd.s32 %s74, 1
      %s76 = scalar_select %p73, %s74, %s75
      %p79 = pneg %p73
      %p80 = scmp.eq.s32.totalorder %s24, 1
      %p81 = por %p79, %p80
      %p82 = scmp.ne.s32.totalorder %s74, %s77
      %p83 = scmp.eq.s32.totalorder %s24, 0
      %p84 = por %p82, %p83
      %p85 = scmp.ne.s32.totalorder %s74, %s77
      %p86 = scmp.eq.s32.totalorder %s29, 1
      %p87 = por %p85, %p86
      %p88 = scmp.ne.s32.totalorder %s77, %s78
      %p89 = scmp.eq.s32.totalorder %s29, 0
      %p90 = por %p88, %p89
      %p91 = scmp.ne.s32.totalorder %s77, %s78
      %p92 = scmp.eq.s32.totalorder %s30, 1
      %p93 = por %p91, %p92
      %p95 = scmp.ne.s32.totalorder %s78, %s94
      %p96 = scmp.eq.s32.totalorder %s30, 0
      %p97 = por %p95, %p96
      %s98 = ssub.s32 %s31, %s43
      %p99 = scmp.eq.s32.totalorder %s98, 0
      %s101 = sadd.s32 %s100, 1
      %s102 = scalar_select %p99, %s100, %s101
      %p105 = pneg %p99
      %p106 = scmp.eq.s32.totalorder %s24, 1
      %p107 = por %p105, %p106
      %p108 = scmp.ne.s32.totalorder %s100, %s103
      %p109 = scmp.eq.s32.totalorder %s24, 0
      %p110 = por %p108, %p109
      %p111 = scmp.ne.s32.totalorder %s100, %s103
      %p112 = scmp.eq.s32.totalorder %s29, 1
      %p113 = por %p111, %p112
      %p114 = scmp.ne.s32.totalorder %s103, %s104
      %p115 = scmp.eq.s32.totalorder %s29, 0
      %p116 = por %p114, %p115
      %p117 = scmp.ne.s32.totalorder %s103, %s104
      %p118 = scmp.eq.s32.totalorder %s30, 1
      %p119 = por %p117, %p118
      %p121 = scmp.ne.s32.totalorder %s104, %s120
      %p122 = scmp.eq.s32.totalorder %s30, 0
      %p123 = por %p121, %p122
      %s124 = ssub.s32 %s31, %s43
      %p125 = scmp.eq.s32.totalorder %s124, 0
      %s127 = sadd.s32 %s126, 1
      %s128 = scalar_select %p125, %s126, %s127
      %p131 = pneg %p125
      %p132 = scmp.eq.s32.totalorder %s24, 1
      %p133 = por %p131, %p132
      %p134 = scmp.ne.s32.totalorder %s126, %s129
      %p135 = scmp.eq.s32.totalorder %s24, 0
      %p136 = por %p134, %p135
      %p137 = scmp.ne.s32.totalorder %s126, %s129
      %p138 = scmp.eq.s32.totalorder %s29, 1
      %p139 = por %p137, %p138
      %p140 = scmp.ne.s32.totalorder %s129, %s130
      %p141 = scmp.eq.s32.totalorder %s29, 0
      %p142 = por %p140, %p141
      %p143 = scmp.ne.s32.totalorder %s129, %s130
      %p144 = scmp.eq.s32.totalorder %s30, 1
      %p145 = por %p143, %p144
      %p147 = scmp.ne.s32.totalorder %s130, %s146
      %p148 = scmp.eq.s32.totalorder %s30, 0
      %p149 = por %p147, %p148
      %s150 = ssub.s32 %s31, %s43
      %s151 = ssub.s32 %s32, %s39
      %s152 = sor.u32 %s150, %s151
      %p153 = scmp.eq.s32.totalorder %s152, 0
      %s155 = sadd.s32 %s154, 1
      %s156 = scalar_select %p153, %s154, %s155
      %p159 = pneg %p153
      %p160 = scmp.eq.s32.totalorder %s24, 1
      %p161 = por %p159, %p160
      %p162 = scmp.ne.s32.totalorder %s154, %s157
      %p163 = scmp.eq.s32.totalorder %s24, 0
      %p164 = por %p162, %p163
      %p165 = scmp.ne.s32.totalorder %s154, %s157
      %p166 = scmp.eq.s32.totalorder %s29, 1
      %p167 = por %p165, %p166
      %p168 = scmp.ne.s32.totalorder %s157, %s158
      %p169 = scmp.eq.s32.totalorder %s29, 0
      %p170 = por %p168, %p169
      %p171 = scmp.ne.s32.totalorder %s157, %s158
      %p172 = scmp.eq.s32.totalorder %s30, 1
      %p173 = por %p171, %p172
      %p175 = scmp.ne.s32.totalorder %s158, %s174
      %p176 = scmp.eq.s32.totalorder %s30, 0
      %p177 = por %p175, %p176
      %p178 = scmp.le.s32.totalorder 1, %s24
      %p179 = scmp.lt.s32.totalorder %s24, 3
      %p180 = pnand %p178, %p179
      %p181 = pneg %p180
      // Predicated region
      $region9: #{_adds_pallas_batched.1} parent=5 // pred_check
        _
      $region10: #{_adds_pallas_batched.1} parent=5 // pred_check_branch
        %183 = sbr.rel (%p180) target = $region12
      $region11: #{_adds_pallas_batched.1} parent=5 // pred_region
        %s184 = ssub.s32 %s24, 1
      $region12: #{_adds_pallas_batched.1} parent=5 // pred_fallthru
        _
      %p185 = scmp.lt.s32.totalorder %s24, 2
      // Predicated region
      $region13: #{_adds_pallas_batched.1} parent=5 // pred_check
        %p186 = pneg %p185
      $region14: #{_adds_pallas_batched.1} parent=5 // pred_check_branch
        %188 = sbr.rel (%p186) target = $region16
      $region15: #{_adds_pallas_batched.1} parent=5 // pred_region
        // Predicated region
        $region17: #{_adds_pallas_batched.1} parent=15 // pred_check
          %p189 = pneg %p56
        $region18: #{_adds_pallas_batched.1} parent=15 // pred_check_branch
          %191 = sbr.rel (%p189) target = $region20
        $region19: #{_adds_pallas_batched.1} parent=15 // pred_region
          %p192 = scmp.lt.s32.totalorder %s31, 1
          %s193 = scalar_select %p192, %s31, 1
          %s194 = smul.addr %s193, 10
          %s195 = smul.addr %s194, 8
          %s196 = scalar_lea.vmem %s1, %s195
        $region20: #{_adds_pallas_batched.1} parent=15 // pred_fallthru
          _
        // Predicated region
        $region21: #{_adds_pallas_batched.1} parent=15 // pred_check
          %p197 = pneg %p84
        $region22: #{_adds_pallas_batched.1} parent=15 // pred_check_branch
          %199 = sbr.rel (%p197) target = $region24
        $region23: #{_adds_pallas_batched.1} parent=15 // pred_region
          %p200 = scmp.lt.s32.totalorder %s31, 1
          %s201 = scalar_select %p200, %s31, 1
          %p202 = scmp.lt.s32.totalorder %s32, 0
          %s203 = scalar_select %p202, %s32, 0
          %s204 = smul.addr %s201, 3
          %s205 = sadd.s32 %s203, %s204
          %s206 = smul.addr %s205, 8
          %s207 = scalar_lea.vmem %s2, %s206
        $region24: #{_adds_pallas_batched.1} parent=15 // pred_fallthru
          _
        // Predicated region
        $region25: #{_adds_pallas_batched.1} parent=15 // pred_check
          %p208 = pneg %p110
        $region26: #{_adds_pallas_batched.1} parent=15 // pred_check_branch
          %210 = sbr.rel (%p208) target = $region28
        $region27: #{_adds_pallas_batched.1} parent=15 // pred_region
          %p211 = scmp.lt.s32.totalorder %s31, 1
          %s212 = scalar_select %p211, %s31, 1
          %s213 = smul.addr %s212, 8
          %s214 = scalar_lea.vmem %s3, %s213
        $region28: #{_adds_pallas_batched.1} parent=15 // pred_fallthru
          _
      $region16: #{_adds_pallas_batched.1} parent=5 // pred_fallthru
        _
      %p215 = scmp.le.s32.totalorder 1, %s24
      %p216 = scmp.lt.s32.totalorder %s24, 3
      %p217 = pnand %p215, %p216
      %p218 = pneg %p217
      // Predicated region
      $region29: #{_adds_pallas_batched.1} parent=5 // pred_check
        _
      $region30: #{_adds_pallas_batched.1} parent=5 // pred_check_branch
        %220 = sbr.rel (%p217) target = $region32
      $region31: #{_adds_pallas_batched.1} parent=5 // pred_region
        %s221 = ssub.s32 %s24, 1
        %p222 = scmp.lt.s32.totalorder %s33, 1
        %s223 = scalar_select %p222, %s33, 1
        %s224 = smul.addr %s223, 10
        %s225 = smul.addr %s224, 8
        %s226 = scalar_lea.vmem %s1, %s225
        %p227 = pneg %p62
        %p228 = pneg %p59
        %p229 = scmp.lt.s32.totalorder %s33, 1
        %s230 = scalar_select %p229, %s33, 1
        %p231 = scmp.lt.s32.totalorder %s34, 0
        %s232 = scalar_select %p231, %s34, 0
        %s233 = smul.addr %s230, 3
        %s234 = sadd.s32 %s232, %s233
        %s235 = smul.addr %s234, 8
        %s236 = scalar_lea.vmem %s2, %s235
        %p237 = pneg %p90
        %p238 = pneg %p87
        %p239 = scmp.lt.s32.totalorder %s33, 1
        %s240 = scalar_select %p239, %s33, 1
        %s241 = smul.addr %s240, 8
        %s242 = scalar_lea.vmem %s3, %s241
        %p243 = pneg %p116
        %p244 = pneg %p113
        %p245 = pneg %p142
        %p246 = pneg %p139
        %s247 = sand.u32 %s129, 1
        %s248 = scalar_lea.sflag [#allocation6], %s247
        %s249 = sand.u32 %s129, 1
        %s250 = scalar_lea.vmem [#allocation5], %s249
        %p251 = pneg %p170
        %p252 = pneg %p167
        %s253 = sand.u32 %s157, 1
        %s254 = scalar_lea.sflag [#allocation8], %s253
        %s255 = sand.u32 %s157, 1
        %s256 = scalar_lea.vmem [#allocation7], %s255
        %p257 = scmp.lt.s32.totalorder %s33, 1
        %s258 = scalar_select %p257, %s33, 1
        %s259 = smul.addr %s258, 10
        %s260 = smul.addr %s259, 8
        %s261 = scalar_lea.vmem %s1, %s260
        %p262 = scmp.lt.s32.totalorder %s33, 1
        %s263 = scalar_select %p262, %s33, 1
        %p264 = scmp.lt.s32.totalorder %s34, 0
        %s265 = scalar_select %p264, %s34, 0
        %s266 = smul.addr %s263, 3
        %s267 = sadd.s32 %s265, %s266
        %s268 = smul.addr %s267, 8
        %s269 = scalar_lea.vmem %s2, %s268
        %p270 = scmp.lt.s32.totalorder %s33, 1
        %s271 = scalar_select %p270, %s33, 1
        %s272 = smul.addr %s271, 8
        %s273 = scalar_lea.vmem %s3, %s272
        %s274 = smul.u32 %s33, 128
        %s275 = sld [smem:[#allocation4 + %s274]]
        %s276 = sadd.s32 %s274, 1
        %s277 = sld [smem:[#allocation4 + %s276]]
        %p278 = scmp.gt.s32.totalorder %s275, 0
        %s279 = smul.u32 %s34, 128
        %p280 = scmp.lt.s32.totalorder %s279, %s277
        %p281 = pnand %p278, %p280
        %p282 = pneg %p281
        // Predicated region
        $region33: #{_adds_pallas_batched.1} parent=31 // pred_check
          _
        $region34: #{_adds_pallas_batched.1} parent=31 // pred_check_branch
          %284 = sbr.rel (%p281) target = $region36
        $region35: #{_adds_pallas_batched.1} parent=31 // pred_region
          %v285 = vld [vmem:[%s261] sm:$0xff]
          %v286 = vld [vmem:[%s261 + $0x8] sm:$0xff]
          %v287 = vld [vmem:[%s261 + $0x10] sm:$0xff]
          %v288 = vld [vmem:[%s261 + $0x18] sm:$0xff]
          %v289 = vld [vmem:[%s261 + $0x20] sm:$0xff]
          %v290 = vld [vmem:[%s261 + $0x28] sm:$0xff]
          %v291 = vld [vmem:[%s261 + $0x30] sm:$0xff]
          %v292 = vld [vmem:[%s261 + $0x38] sm:$0xff]
          %v293 = vld [vmem:[%s261 + $0x40] sm:$0xff]
          %v294 = vld [vmem:[%s261 + $0x48] sm:$0xff]
          %v295 = vld [vmem:[%s269] sm:$0xff]
          %v296 = vld [vmem:[%s269 + $0x8] sm:$0xff]
          %v297 = vld [vmem:[%s269 + $0x10] sm:$0x1f]
          %v298 = vld [vmem:[%s273] sm:$0xff]
          %vm299 = vcmask 171008
          %v301 = vsel %vm299, %v285, 0
          %v304 = vsel %vm299, %v286, 0
          %v307 = vsel %vm299, %v287, 0
          %v310 = vsel %vm299, %v288, 0
          %v313 = vsel %vm299, %v289, 0
          %v316 = vsel %vm299, %v290, 0
          %v319 = vsel %vm299, %v291, 0
          %v322 = vsel %vm299, %v292, 0
          %v325 = vsel %vm299, %v293, 0
          %v328 = vsel %vm299, %v294, 0
          %vm330 = vcmask 1044480
          %v332 = vsel %vm330, %v297, 0
          %334 = vmatprep.subr.mxu0 0.0
          %335 = vmatpush1.msra.mxu0 0.0
          %336 = vmatprep.subr.mxu0 0.0
          %337 = vmatpush1.msra.mxu0 0.0
          %338 = vmatprep.subr.mxu0 0.0
          %339 = vmatpush1.msra.mxu0 0.0
          %340 = vmatprep.subr.mxu0 0.0
          %341 = vmatpush1.msra.mxu0 0.0
          %342 = vmatprep.subr.mxu0 0.0
          %343 = vmatpush1.msra.mxu0 0.0
          %344 = vmatprep.subr.mxu0 0.0
          %345 = vmatpush1.msra.mxu0 0.0
          %346 = vmatprep.subr.mxu0 0.0
          %347 = vmatpush1.msra.mxu0 0.0
          %348 = vmatprep.subr.mxu0 0.0
          %349 = vmatpush1.msra.mxu0 0.0
          %350 = vmatprep.subr.mxu0 0.0
          %351 = vmatpush1.msra.mxu0 0.0
          %352 = vmatprep.subr.mxu0 0.0
          %353 = vmatpush1.msra.mxu0 0.0
          %354 = vmatprep.subr.mxu0 0.0
          %355 = vmatpush1.msra.mxu0 0.0
          %356 = vmatprep.subr.mxu0 0.0
          %357 = vmatpush1.msra.mxu0 0.0
          %358 = vmatprep.subr.mxu0 0.0
          %359 = vmatpush1.msra.mxu0 0.0
          %360 = vmatprep.subr.mxu0 0.0
          %361 = vmatpush1.msra.mxu0 %v332
          %362 = vmatprep.subr.mxu0 0.0
          %363 = vmatpush1.msra.mxu0 %v296
          %364 = vmatprep.subr.mxu0 0.0
          %365 = vmatpush1.msra.mxu0 %v295
          %366 = vmatprep.subr.mxu0 0.0
          %367 = vmatpush2.msra.mxu0 0.0
          %368 = vmatprep.subr.mxu0 0.0
          %369 = vmatpush2.msra.mxu0 0.0
          %370 = vmatprep.subr.mxu0 0.0
          %371 = vmatpush2.msra.mxu0 0.0
          %372 = vmatprep.subr.mxu0 0.0
          %373 = vmatpush2.msra.mxu0 0.0
          %374 = vmatprep.subr.mxu0 0.0
          %375 = vmatpush2.msra.mxu0 0.0
          %376 = vmatprep.subr.mxu0 0.0
          %377 = vmatpush2.msra.mxu0 0.0
          %378 = vmatprep.subr.mxu0 0.0
          %379 = vmatpush2.msra.mxu0 0.0
          %380 = vmatprep.subr.mxu0 0.0
          %381 = vmatpush2.msra.mxu0 0.0
          %382 = vmatprep.subr.mxu0 0.0
          %383 = vmatpush2.msra.mxu0 0.0
          %384 = vmatprep.subr.mxu0 0.0
          %385 = vmatpush2.msra.mxu0 0.0
          %386 = vmatprep.subr.mxu0 0.0
          %387 = vmatpush2.msra.mxu0 0.0
          %388 = vmatprep.subr.mxu0 0.0
          %389 = vmatpush2.msra.mxu0 0.0
          %390 = vmatprep.subr.mxu0 0.0
          %391 = vmatpush2.msra.mxu0 0.0
          %392 = vmatprep.subr.mxu0 0.0
          %393 = vmatpush2.msra.mxu0 0.0
          %394 = vmatprep.subr.mxu0 0.0
          %395 = vmatpush2.msra.mxu0 0.0
          %396 = vmatprep.subr.mxu0 0.0
          %397 = vmatpush2.msra.mxu0 0.0
          %398 = vmatprep.mubr.f32.mxu0 0.0
          %399 = vmatmul.mubr.f32.gmra.mxu0 %v301
          %v400 = vpop.f32.mrf.mxu0
          %v401 = vadd.f32 0.0, %v400
          %v402 = vpop.f32.mrf.mxu0
          %403 = vmatprep.mubr.f32.mxu0 0.0
          %404 = vmatmul.mubr.f32.gmra.mxu0 %v304
          %v405 = vpop.f32.mrf.mxu0
          %v406 = vadd.f32 0.0, %v405
          %v407 = vpop.f32.mrf.mxu0
          %408 = vmatprep.mubr.f32.mxu0 0.0
          %409 = vmatmul.mubr.f32.gmra.mxu0 %v307
          %v410 = vpop.f32.mrf.mxu0
          %v411 = vadd.f32 0.0, %v410
          %v412 = vpop.f32.mrf.mxu0
          %413 = vmatprep.mubr.f32.mxu0 0.0
          %414 = vmatmul.mubr.f32.gmra.mxu0 %v310
          %v415 = vpop.f32.mrf.mxu0
          %v416 = vadd.f32 0.0, %v415
          %v417 = vpop.f32.mrf.mxu0
          %418 = vmatprep.mubr.f32.mxu0 0.0
          %419 = vmatmul.mubr.f32.gmra.mxu0 %v313
          %v420 = vpop.f32.mrf.mxu0
          %v421 = vadd.f32 0.0, %v420
          %v422 = vpop.f32.mrf.mxu0
          %423 = vmatprep.mubr.f32.mxu0 0.0
          %424 = vmatmul.mubr.f32.gmra.mxu0 %v316
          %v425 = vpop.f32.mrf.mxu0
          %v426 = vadd.f32 0.0, %v425
          %v427 = vpop.f32.mrf.mxu0
          %428 = vmatprep.mubr.f32.mxu0 0.0
          %429 = vmatmul.mubr.f32.gmra.mxu0 %v319
          %v430 = vpop.f32.mrf.mxu0
          %v431 = vadd.f32 0.0, %v430
          %v432 = vpop.f32.mrf.mxu0
          %433 = vmatprep.mubr.f32.mxu0 0.0
          %434 = vmatmul.mubr.f32.gmra.mxu0 %v322
          %v435 = vpop.f32.mrf.mxu0
          %v436 = vadd.f32 0.0, %v435
          %v437 = vpop.f32.mrf.mxu0
          %438 = vmatprep.mubr.f32.mxu0 0.0
          %439 = vmatmul.mubr.f32.gmra.mxu0 %v325
          %v440 = vpop.f32.mrf.mxu0
          %v441 = vadd.f32 0.0, %v440
          %v442 = vpop.f32.mrf.mxu0
          %443 = vmatprep.mubr.f32.mxu0 0.0
          %444 = vmatmul.mubr.f32.gmra.mxu0 %v328
          %v445 = vpop.f32.mrf.mxu0
          %v446 = vadd.f32 0.0, %v445
          %v447 = vpop.f32.mrf.mxu0
          %448 = vdwg.mxu0
          %v449 = vmax.f32 %v401, 0.0
          %v450 = vmax.f32 %v406, 0.0
          %v451 = vmax.f32 %v411, 0.0
          %v452 = vmax.f32 %v416, 0.0
          %v453 = vmax.f32 %v421, 0.0
          %v454 = vmax.f32 %v426, 0.0
          %v455 = vmax.f32 %v431, 0.0
          %v456 = vmax.f32 %v436, 0.0
          %v457 = vmax.f32 %v441, 0.0
          %v458 = vmax.f32 %v446, 0.0
          %v459 = vrsqrt.pop %v449
          %v460 = vmul.f32 %v449, %v459
          %vm461 = vcmp.eq.f32.partialorder %v449, inf
          %v462 = vsel %vm461, %v449, %v460
          %vm463 = vcmp.eq.f32.partialorder %v449, 0.0
          %v464 = vand.u32 %v449, 2147483648
          %v465 = vsel %vm463, %v464, %v462
          %v466 = vrsqrt.pop %v450
          %v467 = vmul.f32 %v450, %v466
          %vm468 = vcmp.eq.f32.partialorder %v450, inf
          %v469 = vsel %vm468, %v450, %v467
          %vm470 = vcmp.eq.f32.partialorder %v450, 0.0
          %v471 = vand.u32 %v450, 2147483648
          %v472 = vsel %vm470, %v471, %v469
          %v473 = vrsqrt.pop %v451
          %v474 = vmul.f32 %v451, %v473
          %vm475 = vcmp.eq.f32.partialorder %v451, inf
          %v476 = vsel %vm475, %v451, %v474
          %vm477 = vcmp.eq.f32.partialorder %v451, 0.0
          %v478 = vand.u32 %v451, 2147483648
          %v479 = vsel %vm477, %v478, %v476
          %v480 = vrsqrt.pop %v452
          %v481 = vmul.f32 %v452, %v480
          %vm482 = vcmp.eq.f32.partialorder %v452, inf
          %v483 = vsel %vm482, %v452, %v481
          %vm484 = vcmp.eq.f32.partialorder %v452, 0.0
          %v485 = vand.u32 %v452, 2147483648
          %v486 = vsel %vm484, %v485, %v483
          %v487 = vrsqrt.pop %v453
          %v488 = vmul.f32 %v453, %v487
          %vm489 = vcmp.eq.f32.partialorder %v453, inf
          %v490 = vsel %vm489, %v453, %v488
          %vm491 = vcmp.eq.f32.partialorder %v453, 0.0
          %v492 = vand.u32 %v453, 2147483648
          %v493 = vsel %vm491, %v492, %v490
          %v494 = vrsqrt.pop %v454
          %v495 = vmul.f32 %v454, %v494
          %vm496 = vcmp.eq.f32.partialorder %v454, inf
          %v497 = vsel %vm496, %v454, %v495
          %vm498 = vcmp.eq.f32.partialorder %v454, 0.0
          %v499 = vand.u32 %v454, 2147483648
          %v500 = vsel %vm498, %v499, %v497
          %v501 = vrsqrt.pop %v455
          %v502 = vmul.f32 %v455, %v501
          %vm503 = vcmp.eq.f32.partialorder %v455, inf
          %v504 = vsel %vm503, %v455, %v502
          %vm505 = vcmp.eq.f32.partialorder %v455, 0.0
          %v506 = vand.u32 %v455, 2147483648
          %v507 = vsel %vm505, %v506, %v504
          %v508 = vrsqrt.pop %v456
          %v509 = vmul.f32 %v456, %v508
          %vm510 = vcmp.eq.f32.partialorder %v456, inf
          %v511 = vsel %vm510, %v456, %v509
          %vm512 = vcmp.eq.f32.partialorder %v456, 0.0
          %v513 = vand.u32 %v456, 2147483648
          %v514 = vsel %vm512, %v513, %v511
          %v515 = vrsqrt.pop %v457
          %v516 = vmul.f32 %v457, %v515
          %vm517 = vcmp.eq.f32.partialorder %v457, inf
          %v518 = vsel %vm517, %v457, %v516
          %vm519 = vcmp.eq.f32.partialorder %v457, 0.0
          %v520 = vand.u32 %v457, 2147483648
          %v521 = vsel %vm519, %v520, %v518
          %v522 = vrsqrt.pop %v458
          %v523 = vmul.f32 %v458, %v522
          %vm524 = vcmp.eq.f32.partialorder %v458, inf
          %v525 = vsel %vm524, %v458, %v523
          %vm526 = vcmp.eq.f32.partialorder %v458, 0.0
          %v527 = vand.u32 %v458, 2147483648
          %v528 = vsel %vm526, %v527, %v525
          %v529 = vadd.f32 %v465, %v472
          %v530 = vadd.f32 %v500, %v507
          %v531 = vadd.f32 %v529, %v479
          %v532 = vadd.f32 %v530, %v514
          %v533 = vadd.f32 %v531, %v486
          %v534 = vadd.f32 %v532, %v521
          %v535 = vadd.f32 %v533, %v493
          %v536 = vadd.f32 %v534, %v528
          %v537 = vmin.f32 %v535, %v536
          %v538 = vmul.f32 %v537, 0.2
          %v539 = vlaneseq
          %v540 = vand.u32 %v539, 127
          %v541 = vstv %s279
          %v542 = vadd.s32 %v540, %v541
          %v543 = vstv %s277
          %vm544 = vcmp.lt.s32.totalorder %v542, %v543
          %v545 = vlaneseq
          %v546 = vshrl.u32 %v545, 7
          %v547 = vstv %s275
          %vm548 = vcmp.lt.s32.totalorder %v546, %v547
          %v549 = vsel %vm544, 1, 0
          %vm550 = vcmp.eq.s32.totalorder %v549, 1
          %v551 = vsel %vm550, %v538, 3e+38
          %552 = vmin.xlane.f32.xlu0 %v551
          %v553 = vpop.xlane.xlu0 %552
          %p554 = scmp.eq.s32.totalorder %s34, 0
          // Predicated region
          $region37: #{_adds_pallas_batched.1} parent=35 // pred_check
            %p555 = pneg %p554
          $region38: #{_adds_pallas_batched.1} parent=35 // pred_check_branch
            %557 = sbr.rel (%p555) target = $region40
          $region39: #{_adds_pallas_batched.1} parent=35 // pred_region
            %vm558 = vcmask 7168
            %559 = vst.msk [vmem:[#allocation2] sm:$0xff] %vm558, 3e+38
          $region40: #{_adds_pallas_batched.1} parent=35 // pred_fallthru
            _
          %v560 = vld [vmem:[#allocation2] sm:$0xff]
          %v561 = vmin.f32 %v560, %v553
          %vm562 = vcmask 7168
          %563 = vst.msk [vmem:[#allocation2] sm:$0xff] %vm562, %v561
          %s564 = sadd.s32 %s34, 1
          %s565 = smul.u32 %s564, 128
          %p566 = scmp.ge.s32.totalorder %s565, %s277
          // Predicated region
          $region41: #{_adds_pallas_batched.1} parent=35 // pred_check
            %p567 = pneg %p566
          $region42: #{_adds_pallas_batched.1} parent=35 // pred_check_branch
            %569 = sbr.rel (%p567) target = $region44
          $region43: #{_adds_pallas_batched.1} parent=35 // pred_region
            %v570 = vld [vmem:[#allocation2] sm:$0xff]
            %v571 = vmul.f32 %v298, %v570
            %vm572 = vcmp.eq.s32.totalorder %v546, %v540
            %574 = vset.pattern.permute.xlu0 0
            %575 = vperm.xlu0 %574, %v571
            %v576 = vpop.permute.xlu0 %575
            %v578 = vsel %vm572, %v576, 0.0
            %vm579 = vcmask 64512
            %v580 = vsel %vm579, %v578, 0.0
            %v581 = vrot.slane %v580, 4
            %v582 = vadd.f32 %v580, %v581
            %v583 = vrot.slane %v582, 2
            %v584 = vadd.f32 %v582, %v583
            %v585 = vrot.slane %v584, 1
            %v586 = vadd.f32 %v584, %v585
            %vm587 = vcmask 57344
            %588 = vst.msk [vmem:[%s250] sm:$0x1] %vm587, %v586
          $region44: #{_adds_pallas_batched.1} parent=35 // pred_fallthru
            _
          %v589 = vsel %vm548, 1, 0
          %vm590 = vcmp.eq.s32.totalorder %v589, 1
          %v591 = vsel %vm590, %v538, 3e+38
          %v592 = vrot.slane %v591, 4
          %v593 = vmin.f32 %v591, %v592
          %v594 = vrot.slane %v593, 2
          %v595 = vmin.f32 %v593, %v594
          %v596 = vrot.slane %v595, 1
          %v597 = vmin.f32 %v595, %v596
          %vm598 = vcmp.eq.f32.partialorder %v591, %v597
          %v599 = vsel %vm598, %v546, 8
          %v600 = vrot.slane %v599, 4
          %vm601 = vcmp.lt.s32.totalorder %v599, %v600
          %v602 = vsel %vm601, %v599, %v600
          %v603 = vrot.slane %v602, 2
          %vm604 = vcmp.lt.s32.totalorder %v602, %v603
          %v605 = vsel %vm604, %v602, %v603
          %v606 = vrot.slane %v605, 1
          %vm607 = vcmp.lt.s32.totalorder %v605, %v606
          %v608 = vsel %vm607, %v605, %v606
          %vm609 = vcmp.eq.s32.totalorder %v546, %v608
          %611 = vset.pattern.permute.xlu0 0
          %612 = vperm.xlu0 %611, %v298
          %v613 = vpop.permute.xlu0 %612
          %v615 = vsel %vm609, %v613, 0.0
          %v616 = vrot.slane %v615, 4
          %v617 = vadd.f32 %v615, %v616
          %v618 = vrot.slane %v617, 2
          %v619 = vadd.f32 %v617, %v618
          %v620 = vrot.slane %v619, 1
          %v621 = vadd.f32 %v619, %v620
          %v622 = vmul.f32 %v621, %v597
          %623 = vst [vmem:[%s256] sm:$0x1] %v622
        $region36: #{_adds_pallas_batched.1} parent=31 // pred_fallthru
          _
        %s624 = sand.u32 %s129, 1
        %s625 = scalar_lea.sflag [#allocation6], %s624
        %s626 = sand.u32 %s129, 1
        %s627 = scalar_lea.vmem [#allocation5], %s626
        %s628 = sand.u32 %s157, 1
        %s629 = scalar_lea.sflag [#allocation8], %s628
        %s630 = sand.u32 %s157, 1
        %s631 = scalar_lea.vmem [#allocation7], %s630
        // Predicated region
        $region45: #{_adds_pallas_batched.1} parent=31 // pred_check
          %p632 = pneg %p139
        $region46: #{_adds_pallas_batched.1} parent=31 // pred_check_branch
          %634 = sbr.rel (%p632) target = $region48
        $region47: #{_adds_pallas_batched.1} parent=31 // pred_region
          %s636 = ssub.s32 16, 16
          %637 = vsyncadd %s625, %s636
          %s638 = smul.addr %s33, 16
          %s639 = scalar_lea.hbm %s4, %s638
          %s641 = sshll.u32 %s627, 4
          %s642 = int_to_ptr.vmem [resolvable:$true] %s641
          %644 = dma.vmem_to_hbm [thread:$0]  %s642, 16, %s639, %s625
        $region48: #{_adds_pallas_batched.1} parent=31 // pred_fallthru
          _
        // Predicated region
        $region49: #{_adds_pallas_batched.1} parent=31 // pred_check
          %p645 = pneg %p167
        $region50: #{_adds_pallas_batched.1} parent=31 // pred_check_branch
          %647 = sbr.rel (%p645) target = $region52
        $region51: #{_adds_pallas_batched.1} parent=31 // pred_region
          %s649 = ssub.s32 16, 16
          %650 = vsyncadd %s629, %s649
          %s651 = sadd.s32 %s34, %s33
          %s652 = smul.addr %s651, 16
          %s653 = scalar_lea.hbm %s5, %s652
          %s655 = sshll.u32 %s631, 4
          %s656 = int_to_ptr.vmem [resolvable:$true] %s655
          %658 = dma.vmem_to_hbm [thread:$0]  %s656, 16, %s653, %s629
        $region52: #{_adds_pallas_batched.1} parent=31 // pred_fallthru
          _
      $region32: #{_adds_pallas_batched.1} parent=5 // pred_fallthru
        _
      %p659 = scmp.le.s32.totalorder 2, %s24
      // Predicated region
      $region53: #{_adds_pallas_batched.1} parent=5 // pred_check
        %p660 = pneg %p659
      $region54: #{_adds_pallas_batched.1} parent=5 // pred_check_branch
        %662 = sbr.rel (%p660) target = $region56
      $region55: #{_adds_pallas_batched.1} parent=5 // pred_region
        %s663 = ssub.s32 %s24, 2
        // Predicated region
        $region57: #{_adds_pallas_batched.1} parent=55 // pred_check
          %p664 = pneg %p145
        $region58: #{_adds_pallas_batched.1} parent=55 // pred_check_branch
          %666 = sbr.rel (%p664) target = $region60
        $region59: #{_adds_pallas_batched.1} parent=55 // pred_region
          %s667 = sand.u32 %s130, 1
          %s668 = scalar_lea.sflag [#allocation6], %s667
          %s669 = sand.u32 %s130, 1
          %s670 = scalar_lea.vmem [#allocation5], %s669
          %671 = dma.done %s668, 16
        $region60: #{_adds_pallas_batched.1} parent=55 // pred_fallthru
          _
        // Predicated region
        $region61: #{_adds_pallas_batched.1} parent=55 // pred_check
          %p672 = pneg %p173
        $region62: #{_adds_pallas_batched.1} parent=55 // pred_check_branch
          %674 = sbr.rel (%p672) target = $region64
        $region63: #{_adds_pallas_batched.1} parent=55 // pred_region
          %s675 = sand.u32 %s158, 1
          %s676 = scalar_lea.sflag [#allocation8], %s675
          %s677 = sand.u32 %s158, 1
          %s678 = scalar_lea.vmem [#allocation7], %s677
          %679 = dma.done %s676, 16
        $region64: #{_adds_pallas_batched.1} parent=55 // pred_fallthru
          _
      $region56: #{_adds_pallas_batched.1} parent=5 // pred_fallthru
        _
    $region6: #{_adds_pallas_batched.1} parent=1 // loop_footer
      %s28 = sadd.s32 1, %s24
    $region7: #{_adds_pallas_batched.1} parent=1 // loop_footer_branch
      %23 = sbr.rel target = $region3
    $region8: #{_adds_pallas_batched.1} parent=1 // loop_exit
      _
    %680 = vsyncpa [#allocation6], 1
    %s681 = scalar_lea.sflag [#allocation6], 1
    %682 = vsyncpa %s681, 1
    %683 = vsyncpa [#allocation8], 1
    %s684 = scalar_lea.sflag [#allocation8], 1
    %685 = vsyncpa %s684, 1

</llo_original>
